<compile_context>
chip_gen: v7x
topology: tpu7x:2x2x1
jax: 0.10.0
libtpu: 0.0.40
codegen_flags: <defaults>
</compile_context>

<pallas_src>
import functools

import jax
import jax.numpy as jnp
from jax import lax
from jax.experimental import pallas as pl
from jax.experimental.pallas import tpu as pltpu


def _round_up(a: int, b: int) -> int:
    return (a + b - 1) // b * b


def _logit_kernel(x_ref, w_ref, b_ref, ot_ref, acc_ref):
    """One (i, j, k) grid step.

    x_ref  : (block_m, block_k) bf16  -- rows of x
    w_ref  : (block_n, block_k) bf16  -- rows of W (PyTorch layout, contract on k)
    b_ref  : (block_n, 1)       f32   -- bias column
    ot_ref : (block_n, block_m) f32   -- transposed output tile (lane-dense in M)
    acc_ref: (block_n, block_m) f32   -- VMEM accumulator, lives across K steps
    """
    k = pl.program_id(2)

    @pl.when(k == 0)
    def _init():
        acc_ref[...] = jnp.zeros_like(acc_ref)

    # (block_n, block_m) += W_tile . x_tile^T, contracted over k (MXU, f32 acc).
    acc_ref[...] += lax.dot_general(
        w_ref[...], x_ref[...],
        dimension_numbers=(((1,), (1,)), ((), ())),
        preferred_element_type=jnp.float32)

    @pl.when(k == pl.num_programs(2) - 1)
    def _finalize():
        z = acc_ref[...] + b_ref[...]            # bias broadcasts over M lanes
        # sigmoid(z) = 1 / (1 + exp(-z)); exp and reciprocal both go to the EUP.
        ot_ref[...] = pl.reciprocal(1.0 + jnp.exp(-z), approx=True).astype(
            ot_ref.dtype)


@functools.partial(
    jax.jit, static_argnames=("block_m", "block_n", "block_k", "compute_dtype"))
def logit_forward(x, weight, bias, *, block_m=512, block_n=256, block_k=512,
                  compute_dtype=jnp.bfloat16):
    """Forward pass of _Logit.

    Args:
      x:      any shape whose trailing dims flatten to (-1, din)
      weight: (dout, din)  -- PyTorch nn.Linear weight layout
      bias:   (dout,)
    Returns:
      (M, dout) float32, M = x.size // din.
    """
    dout, din = weight.shape
    x2 = x.reshape(-1, din)
    M = x2.shape[0]

    # ---- tile sizes (clamped so tiny problems stay tiny) ---------------------
    bm = min(block_m, _round_up(M, 8))           # rows per step, multiple of 8
    bn = dout if dout <= block_n else block_n    # full dout, or tile N
    bk = din if din <= 1024 else block_k         # full din, or tile K

    m_pad = _round_up(M, bm)
    n_pad = _round_up(dout, bn)
    k_pad = _round_up(din, bk)

    # ---- operands: bf16 inputs, f32 bias; zero-pad only when needed ----------
    x2 = x2.astype(compute_dtype)
    w = weight.astype(compute_dtype)             # stays in (dout, din) layout
    b = bias.astype(jnp.float32).reshape(dout, 1)

    if (m_pad, k_pad) != (M, din):
        x2 = jnp.pad(x2, ((0, m_pad - M), (0, k_pad - din)))
    if (n_pad, k_pad) != (dout, din):
        w = jnp.pad(w, ((0, n_pad - dout), (0, k_pad - din)))
    if n_pad != dout:
        b = jnp.pad(b, ((0, n_pad - dout), (0, 0)))

    grid = (m_pad // bm, n_pad // bn, k_pad // bk)

    out_t = pl.pallas_call(
        _logit_kernel,
        out_shape=jax.ShapeDtypeStruct((n_pad, m_pad), jnp.float32),
        grid_spec=pltpu.PrefetchScalarGridSpec(
            num_scalar_prefetch=0,
            grid=grid,
            in_specs=[
                pl.BlockSpec((bm, bk), lambda i, j, k: (i, k)),   # x rows
                pl.BlockSpec((bn, bk), lambda i, j, k: (j, k)),   # W rows
                pl.BlockSpec((bn, 1), lambda i, j, k: (j, 0)),    # bias
            ],
            out_specs=pl.BlockSpec((bn, bm), lambda i, j, k: (j, i)),
            scratch_shapes=[pltpu.VMEM((bn, bm), jnp.float32)],
        ),
        compiler_params=pltpu.CompilerParams(
            dimension_semantics=("parallel", "parallel", "arbitrary"),
            vmem_limit_bytes=32 * 1024 * 1024,
        ),
    )(x2, w, b)

    # Back to the PyTorch (M, dout) layout; for dout == 1 this is just a reshape.
    return out_t[:dout, :M].T


if __name__ == "__main__":
    din, dout = 32, 1

    key = jax.random.PRNGKey(0)
    kx, kw, kb = jax.random.split(key, 3)

    # Deterministic synthetic parameters (same shapes as torch.nn.Linear(din, dout)).
    bound = 1.0 / (din ** 0.5)
    weight = jax.random.uniform(kw, (dout, din), jnp.float32, -bound, bound)
    bias = jax.random.uniform(kb, (dout,), jnp.float32, -bound, bound)

    # Multi-dim input (exercises x.view(-1, din)); 4*75 = 300 rows also exercises
    # the non-divisible-M padding path.
    x = jax.random.normal(kx, (4, 75, din), jnp.float32)

    out = logit_forward(x, weight, bias)
    jax.block_until_ready(out)

    # Reference in plain f32 JAX (kernel uses bf16 inputs + f32 accumulation).
    ref = jax.nn.sigmoid(x.reshape(-1, din) @ weight.T + bias)
    assert out.shape == (300, dout), out.shape
    assert jnp.allclose(out, ref, atol=1e-2), float(jnp.max(jnp.abs(out - ref)))

    print("KERNEL_OK")
</pallas_src>

<mosaic_0001>
module attributes {stable_mosaic.version = 11 : i64} {
  func.func @_logit_kernel(%arg0: i32, %arg1: i32, %arg2: i32, %arg3: memref<304x32xbf16, #tpu.memory_space<vmem>>, %arg4: memref<1x32xbf16, #tpu.memory_space<vmem>>, %arg5: memref<1x1xf32, #tpu.memory_space<vmem>>, %arg6: memref<1x304xf32, #tpu.memory_space<vmem>>, %arg7: memref<1x304xf32, #tpu.memory_space<vmem>>) attributes {dimension_semantics = [#tpu.dimension_semantics<parallel>, #tpu.dimension_semantics<parallel>, #tpu.dimension_semantics<arbitrary>], iteration_bounds = array<i64: 1, 1, 1>, scalar_prefetch = 0 : i64, scratch_operands = 1 : i64, tpu.core_type = #tpu.core_type<tc>, window_params = [{transform_indices = @transform_0, window_bounds = array<i64: 304, 32>}, {transform_indices = @transform_1, window_bounds = array<i64: 1, 32>}, {transform_indices = @transform_2, window_bounds = array<i64: 1, 1>}, {transform_indices = @transform_3, window_bounds = array<i64: 1, 304>}]} {
    %c0_i32 = arith.constant 0 : i32
    %0 = arith.cmpi eq, %arg2, %c0_i32 : i32
    %1 = arith.extui %0 : i1 to i32
    %c0_i32_0 = arith.constant 0 : i32
    %2 = arith.cmpi ne, %1, %c0_i32_0 : i32
    scf.if %2 {
      %cst_10 = arith.constant 0.000000e+00 : f32
      %12 = vector.broadcast %cst_10 : f32 to vector<1x304xf32>
      %c0_11 = arith.constant 0 : index
      %c0_12 = arith.constant 0 : index
      %13 = vector.load %arg7[%c0_11, %c0_12] : memref<1x304xf32, #tpu.memory_space<vmem>>, vector<1x304xf32>
      tpu.vector_store %arg7[%c0_11, %c0_12], %12 {strides = array<i32>} : memref<1x304xf32, #tpu.memory_space<vmem>>, vector<1x304xf32>,
    } else {
    }
    %c0 = arith.constant 0 : index
    %c0_1 = arith.constant 0 : index
    %3 = vector.load %arg7[%c0, %c0_1] : memref<1x304xf32, #tpu.memory_space<vmem>>, vector<1x304xf32>
    %c0_2 = arith.constant 0 : index
    %c0_3 = arith.constant 0 : index
    %4 = vector.load %arg4[%c0_2, %c0_3] : memref<1x32xbf16, #tpu.memory_space<vmem>>, vector<1x32xbf16>
    %c0_4 = arith.constant 0 : index
    %c0_5 = arith.constant 0 : index
    %5 = vector.load %arg3[%c0_4, %c0_5] : memref<304x32xbf16, #tpu.memory_space<vmem>>, vector<304x32xbf16>
    %cst = arith.constant dense<0.000000e+00> : vector<1x304xf32>
    %6 = tpu.matmul %4, %5, %cst {dimension_numbers = #tpu.dot_dimension_numbers<[1], [1], [0], [0], [0, 0, 1, 0], [], []>} : vector<1x32xbf16>, vector<304x32xbf16>, vector<1x304xf32> -> vector<1x304xf32>
    %7 = arith.addf %3, %6 : vector<1x304xf32>
    %c0_6 = arith.constant 0 : index
    %c0_7 = arith.constant 0 : index
    %8 = vector.load %arg7[%c0_6, %c0_7] : memref<1x304xf32, #tpu.memory_space<vmem>>, vector<1x304xf32>
    tpu.vector_store %arg7[%c0_6, %c0_7], %7 {strides = array<i32>} : memref<1x304xf32, #tpu.memory_space<vmem>>, vector<1x304xf32>,
    %c0_i32_8 = arith.constant 0 : i32
    %9 = arith.cmpi eq, %arg2, %c0_i32_8 : i32
    %10 = arith.extui %9 : i1 to i32
    %c0_i32_9 = arith.constant 0 : i32
    %11 = arith.cmpi ne, %10, %c0_i32_9 : i32
    scf.if %11 {
      %c0_10 = arith.constant 0 : index
      %c0_11 = arith.constant 0 : index
      %12 = vector.load %arg7[%c0_10, %c0_11] : memref<1x304xf32, #tpu.memory_space<vmem>>, vector<1x304xf32>
      %c0_12 = arith.constant 0 : index
      %c0_13 = arith.constant 0 : index
      %13 = vector.load %arg5[%c0_12, %c0_13] : memref<1x1xf32, #tpu.memory_space<vmem>>, vector<1x1xf32>
      %14 = vector.broadcast %13 : vector<1x1xf32> to vector<1x304xf32>
      %15 = arith.addf %12, %14 : vector<1x304xf32>
      %cst_14 = arith.constant 0.000000e+00 : f32
      %16 = vector.broadcast %cst_14 : f32 to vector<1x304xf32>
      %17 = arith.subf %16, %15 : vector<1x304xf32>
      %18 = math.exp %17 : vector<1x304xf32>
      %cst_15 = arith.constant 1.000000e+00 : f32
      %19 = vector.broadcast %cst_15 : f32 to vector<1x304xf32>
      %20 = arith.addf %19, %18 : vector<1x304xf32>
      %21 = tpu.reciprocal %20 {approx = true} : vector<1x304xf32> -> vector<1x304xf32>
      %c0_16 = arith.constant 0 : index
      %c0_17 = arith.constant 0 : index
      %22 = vector.load %arg6[%c0_16, %c0_17] : memref<1x304xf32, #tpu.memory_space<vmem>>, vector<1x304xf32>
      tpu.vector_store %arg6[%c0_16, %c0_17], %21 {strides = array<i32>} : memref<1x304xf32, #tpu.memory_space<vmem>>, vector<1x304xf32>,
    } else {
    }
    return
  }
  func.func @transform_0(%arg0: i32, %arg1: i32, %arg2: i32) -> (i32, i32) {
    %c0_i32 = arith.constant 0 : i32
    return %arg0, %arg2 : i32, i32
  }
  func.func @transform_1(%arg0: i32, %arg1: i32, %arg2: i32) -> (i32, i32) {
    %c0_i32 = arith.constant 0 : i32
    return %arg1, %arg2 : i32, i32
  }
  func.func @transform_2(%arg0: i32, %arg1: i32, %arg2: i32) -> (i32, i32) {
    %c0_i32 = arith.constant 0 : i32
    %c0_i32_0 = arith.constant 0 : i32
    return %arg1, %c0_i32 : i32, i32
  }
  func.func @transform_3(%arg0: i32, %arg1: i32, %arg2: i32) -> (i32, i32) {
    %c0_i32 = arith.constant 0 : i32
    return %arg1, %arg0 : i32, i32
  }
}

</mosaic_0001>

<llo_original>
// kernel: logit_forward.1
$region0: #{logit_forward.1}
  #allocation0 [shape = 'u32[]', space=smem, size = 0x4, offset = 0x4, fixed_abs, tag = 'smem constant byte address 0x4 - core index']
  #allocation1 [shape = 'u32[144,128]{1,0:T(1,128)}', space=vmem, size = 0x12000, scoped, tag = 'internal scratch']
  #allocation2 [shape = 'f32[1,304]{1,0:T(1,128)}', space=vmem, size = 0x600, scoped, tag = 'scratch operand']
  #allocation3 [shape = 'f32[1,1]{1,0:T(1,128)S(1)}', space=vmem, size = 0x200, scoped, tag = 'scoped memory for logit_forward.1']
  %s0 = inlined_call_operand.vmem [shape: bf16[304,32], index: 0, kind: input, shape index: {}]
  %s1 = inlined_call_operand.vmem [shape: bf16[1,32], index: 1, kind: input, shape index: {}]
  %s2 = inlined_call_operand.<no memory space> [shape: f32[1,1], index: 2, kind: input, shape index: {}]
  %s3 = inlined_call_operand.vmem [shape: f32[1,304], index: 3, kind: output, shape index: {}]
  %s4 = sld [smem:[#allocation0]]
  $region30: #{logit_forward.1} parent=0
    _
  %s6 = ssub.s32 1, %s4
  %s7 = scalar_select 0, %s6, %s4
  %v8 = vstv %s2
  %9 = vst [vmem:[#allocation3] sm:$0x1] %v8
  // Predicated region
  $region2: #{logit_forward.1} parent=0 // pred_check
    _
  $region3: #{logit_forward.1} parent=0 // pred_check_branch
    %11 = sbr.rel (0) target = $region5
  $region4: #{logit_forward.1} parent=0 // pred_region
    _
  $region5: #{logit_forward.1} parent=0 // pred_fallthru
    _
  // Predicated region
  $region6: #{logit_forward.1} parent=0 // pred_check
    _
  $region7: #{logit_forward.1} parent=0 // pred_check_branch
    %13 = sbr.rel (0) target = $region9
  $region8: #{logit_forward.1} parent=0 // pred_region
    _
  $region9: #{logit_forward.1} parent=0 // pred_fallthru
    _
  // Predicated region
  $region10: #{logit_forward.1} parent=0 // pred_check
    _
  $region11: #{logit_forward.1} parent=0 // pred_check_branch
    %15 = sbr.rel (0) target = $region13
  $region12: #{logit_forward.1} parent=0 // pred_region
    _
  $region13: #{logit_forward.1} parent=0 // pred_fallthru
    _
  %p17 = scmp.eq.s32.totalorder 0, 0
  // Predicated region
  $region14: #{logit_forward.1} parent=0 // pred_check
    %p18 = pneg %p17
  $region15: #{logit_forward.1} parent=0 // pred_check_branch
    %20 = sbr.rel (%p18) target = $region17
  $region16: #{logit_forward.1} parent=0 // pred_region
    %v21 = vlaneseq
    %vm22 = vcmp.ge.s32.totalorder %v21, 0
    %vm23 = vcmp.lt.s32.totalorder %v21, 304
    %vm24 = vmand %vm22, %vm23
    %25 = vst.msk [vmem:[#allocation2] sm:$0x7] %vm24, 0.0
  $region17: #{logit_forward.1} parent=0 // pred_fallthru
    _
  %v26 = vld [vmem:[#allocation2] sm:$0x7]
  %v27 = vld [vmem:[%s1] sm:$0x1]
  %v28 = vld [vmem:[%s0] sm:$0xf]
  %v29 = vld [vmem:[%s0 + $0x4] sm:$0xf]
  %v30 = vld [vmem:[%s0 + $0x8] sm:$0xf]
  %v31 = vld [vmem:[%s0 + $0xc] sm:$0xf]
  %v32 = vld [vmem:[%s0 + $0x10] sm:$0xf]
  %v33 = vld [vmem:[%s0 + $0x14] sm:$0xf]
  %v34 = vld [vmem:[%s0 + $0x18] sm:$0xf]
  %v35 = vld [vmem:[%s0 + $0x1c] sm:$0xf]
  %v36 = vld [vmem:[%s0 + $0x20] sm:$0xf]
  %v37 = vld [vmem:[%s0 + $0x24] sm:$0xf]
  %v38 = vld [vmem:[%s0 + $0x28] sm:$0xf]
  %v39 = vld [vmem:[%s0 + $0x2c] sm:$0xf]
  %v40 = vld [vmem:[%s0 + $0x30] sm:$0xf]
  %v41 = vld [vmem:[%s0 + $0x34] sm:$0xf]
  %v42 = vld [vmem:[%s0 + $0x38] sm:$0xf]
  %v43 = vld [vmem:[%s0 + $0x3c] sm:$0xf]
  %v44 = vld [vmem:[%s0 + $0x40] sm:$0xf]
  %v45 = vld [vmem:[%s0 + $0x44] sm:$0xf]
  %v46 = vld [vmem:[%s0 + $0x48] sm:$0xf]
  %v47 = vld [vmem:[%s0 + $0x4c] sm:$0xf]
  %v48 = vld [vmem:[%s0 + $0x50] sm:$0xf]
  %v49 = vld [vmem:[%s0 + $0x54] sm:$0xf]
  %v50 = vld [vmem:[%s0 + $0x58] sm:$0xf]
  %v51 = vld [vmem:[%s0 + $0x5c] sm:$0xf]
  %v52 = vld [vmem:[%s0 + $0x60] sm:$0xf]
  %v53 = vld [vmem:[%s0 + $0x64] sm:$0xf]
  %v54 = vld [vmem:[%s0 + $0x68] sm:$0xf]
  %v55 = vld [vmem:[%s0 + $0x6c] sm:$0xf]
  %v56 = vld [vmem:[%s0 + $0x70] sm:$0xf]
  %v57 = vld [vmem:[%s0 + $0x74] sm:$0xf]
  %v58 = vld [vmem:[%s0 + $0x78] sm:$0xf]
  %v59 = vld [vmem:[%s0 + $0x7c] sm:$0xf]
  %v60 = vld [vmem:[%s0 + $0x80] sm:$0xf]
  %v61 = vld [vmem:[%s0 + $0x84] sm:$0xf]
  %v62 = vld [vmem:[%s0 + $0x88] sm:$0xf]
  %v63 = vld [vmem:[%s0 + $0x8c] sm:$0xf]
  %v64 = vld [vmem:[%s0 + $0x90] sm:$0xf]
  %v65 = vld [vmem:[%s0 + $0x94] sm:$0xf]
  %v104 = vunpack.c.l.b16 %v28
  %v105 = vunpack.c.l.b16 %v29
  %v106 = vunpack.c.l.b16 %v30
  %v107 = vunpack.c.l.b16 %v31
  %v108 = vunpack.c.l.b16 %v32
  %v109 = vunpack.c.l.b16 %v33
  %v110 = vunpack.c.l.b16 %v34
  %v111 = vunpack.c.l.b16 %v35
  %v112 = vunpack.c.l.b16 %v36
  %v113 = vunpack.c.l.b16 %v37
  %v114 = vunpack.c.l.b16 %v38
  %v115 = vunpack.c.l.b16 %v39
  %v116 = vunpack.c.l.b16 %v40
  %v117 = vunpack.c.l.b16 %v41
  %v118 = vunpack.c.l.b16 %v42
  %v119 = vunpack.c.l.b16 %v43
  %v120 = vunpack.c.l.b16 %v44
  %v121 = vunpack.c.l.b16 %v45
  %v122 = vunpack.c.l.b16 %v46
  %v123 = vunpack.c.l.b16 %v47
  %v124 = vunpack.c.l.b16 %v48
  %v125 = vunpack.c.l.b16 %v49
  %v126 = vunpack.c.l.b16 %v50
  %v127 = vunpack.c.l.b16 %v51
  %v128 = vunpack.c.l.b16 %v52
  %v129 = vunpack.c.l.b16 %v53
  %v130 = vunpack.c.l.b16 %v54
  %v131 = vunpack.c.l.b16 %v55
  %v132 = vunpack.c.l.b16 %v56
  %v133 = vunpack.c.l.b16 %v57
  %v134 = vunpack.c.l.b16 %v58
  %v135 = vunpack.c.l.b16 %v59
  %v136 = vunpack.c.l.b16 %v60
  %v137 = vunpack.c.l.b16 %v61
  %v138 = vunpack.c.l.b16 %v62
  %v139 = vunpack.c.l.b16 %v63
  %v140 = vunpack.c.l.b16 %v64
  %v141 = vunpack.c.l.b16 %v65
  %v142 = vpack.c.b16 %v105, %v104
  %v143 = vpack.c.b16 %v107, %v106
  %v144 = vpack.c.b16 %v109, %v108
  %v145 = vpack.c.b16 %v111, %v110
  %v146 = vpack.c.b16 %v113, %v112
  %v147 = vpack.c.b16 %v115, %v114
  %v148 = vpack.c.b16 %v117, %v116
  %v149 = vpack.c.b16 %v119, %v118
  %v150 = vpack.c.b16 %v121, %v120
  %v151 = vpack.c.b16 %v123, %v122
  %v152 = vpack.c.b16 %v125, %v124
  %v153 = vpack.c.b16 %v127, %v126
  %v154 = vpack.c.b16 %v129, %v128
  %v155 = vpack.c.b16 %v131, %v130
  %v156 = vpack.c.b16 %v133, %v132
  %v157 = vpack.c.b16 %v135, %v134
  %v158 = vpack.c.b16 %v137, %v136
  %v159 = vpack.c.b16 %v139, %v138
  %v160 = vpack.c.b16 %v141, %v140
  %vm161 = vcmask 261120
  %v163 = vsel %vm161, %v27, 0
  %v166 = vsel %vm161, %v142, 0
  %v169 = vsel %vm161, %v143, 0
  %v172 = vsel %vm161, %v144, 0
  %v175 = vsel %vm161, %v145, 0
  %v178 = vsel %vm161, %v146, 0
  %v181 = vsel %vm161, %v147, 0
  %v184 = vsel %vm161, %v148, 0
  %v187 = vsel %vm161, %v149, 0
  %v190 = vsel %vm161, %v150, 0
  %v193 = vsel %vm161, %v151, 0
  %v196 = vsel %vm161, %v152, 0
  %v199 = vsel %vm161, %v153, 0
  %v202 = vsel %vm161, %v154, 0
  %v205 = vsel %vm161, %v155, 0
  %v208 = vsel %vm161, %v156, 0
  %v211 = vsel %vm161, %v157, 0
  %v214 = vsel %vm161, %v158, 0
  %v217 = vsel %vm161, %v159, 0
  %v220 = vsel %vm161, %v160, 0
  %222 = vmatprep.subr.bf16.mxu0 0
  %223 = vmatpush1.bf16.xpose.msra.mxu0 %v166
  %224 = vmatprep.subr.bf16.mxu0 0
  %225 = vmatpush1.bf16.xpose.msra.mxu0 %v169
  %226 = vmatprep.subr.bf16.mxu0 0
  %227 = vmatpush1.bf16.xpose.msra.mxu0 %v172
  %228 = vmatprep.subr.bf16.mxu0 0
  %229 = vmatpush1.bf16.xpose.msra.mxu0 %v175
  %230 = vmatprep.subr.bf16.mxu0 0
  %231 = vmatpush1.bf16.xpose.msra.mxu0 %v178
  %232 = vmatprep.subr.bf16.mxu0 0
  %233 = vmatpush1.bf16.xpose.msra.mxu0 %v181
  %234 = vmatprep.subr.bf16.mxu0 0
  %235 = vmatpush1.bf16.xpose.msra.mxu0 %v184
  %236 = vmatprep.subr.bf16.mxu0 0
  %237 = vmatpush1.bf16.xpose.msra.mxu0 %v187
  %238 = vmatprep.subr.bf16.mxu0 0
  %239 = vmatpush1.bf16.xpose.msra.mxu0 %v190
  %240 = vmatprep.subr.bf16.mxu0 0
  %241 = vmatpush1.bf16.xpose.msra.mxu0 %v193
  %242 = vmatprep.subr.bf16.mxu0 0
  %243 = vmatpush1.bf16.xpose.msra.mxu0 %v196
  %244 = vmatprep.subr.bf16.mxu0 0
  %245 = vmatpush1.bf16.xpose.msra.mxu0 %v199
  %246 = vmatprep.subr.bf16.mxu0 0
  %247 = vmatpush1.bf16.xpose.msra.mxu0 %v202
  %248 = vmatprep.subr.bf16.mxu0 0
  %249 = vmatpush1.bf16.xpose.msra.mxu0 %v205
  %250 = vmatprep.subr.bf16.mxu0 0
  %251 = vmatpush1.bf16.xpose.msra.mxu0 %v208
  %252 = vmatprep.subr.bf16.mxu0 0
  %253 = vmatpush1.bf16.xpose.msra.mxu0 %v211
  %254 = vmatprep.mubr.bf16.mxu0 0
  %255 = vmatmul.mubr.bf16.gmra.mrb[0].mxu0 %v163
  %v256 = vpop.f32.mrb[0].mxu0
  %v257 = vadd.f32 0.0, %v256
  %v258 = vpop.f32.mrb[0].mxu0
  %v259 = vadd.f32 0.0, %v258
  %v260 = vpop.f32.mrb[0].mxu0
  %v261 = vpop.f32.mrb[0].mxu0
  %262 = vdwg.mxu0
  %263 = vmatprep.subr.bf16.mxu0 0
  %264 = vmatpush1.bf16.xpose.msra.mxu0 %v214
  %265 = vmatprep.subr.bf16.mxu0 0
  %266 = vmatpush1.bf16.xpose.msra.mxu0 %v217
  %267 = vmatprep.subr.bf16.mxu0 0
  %268 = vmatpush1.bf16.xpose.msra.mxu0 %v220
  %269 = vmatprep.subr.bf16.mxu0 0
  %270 = vmatpush1.bf16.xpose.msra.mxu0 0
  %271 = vmatprep.subr.bf16.mxu0 0
  %272 = vmatpush1.bf16.xpose.msra.mxu0 0
  %273 = vmatprep.subr.bf16.mxu0 0
  %274 = vmatpush1.bf16.xpose.msra.mxu0 0
  %275 = vmatprep.subr.bf16.mxu0 0
  %276 = vmatpush1.bf16.xpose.msra.mxu0 0
  %277 = vmatprep.subr.bf16.mxu0 0
  %278 = vmatpush1.bf16.xpose.msra.mxu0 0
  %279 = vmatprep.subr.bf16.mxu0 0
  %280 = vmatpush1.bf16.xpose.msra.mxu0 0
  %281 = vmatprep.subr.bf16.mxu0 0
  %282 = vmatpush1.bf16.xpose.msra.mxu0 0
  %283 = vmatprep.subr.bf16.mxu0 0
  %284 = vmatpush1.bf16.xpose.msra.mxu0 0
  %285 = vmatprep.subr.bf16.mxu0 0
  %286 = vmatpush1.bf16.xpose.msra.mxu0 0
  %287 = vmatprep.subr.bf16.mxu0 0
  %288 = vmatpush1.bf16.xpose.msra.mxu0 0
  %289 = vmatprep.subr.bf16.mxu0 0
  %290 = vmatpush1.bf16.xpose.msra.mxu0 0
  %291 = vmatprep.subr.bf16.mxu0 0
  %292 = vmatpush1.bf16.xpose.msra.mxu0 0
  %293 = vmatprep.subr.bf16.mxu0 0
  %294 = vmatpush1.bf16.xpose.msra.mxu0 0
  %295 = vmatprep.mubr.bf16.mxu0 0
  %296 = vmatmul.mubr.bf16.gmra.mrb[0].mxu0 %v163
  %v297 = vpop.f32.mrb[0].mxu0
  %v298 = vadd.f32 0.0, %v297
  %v299 = vpop.f32.mrb[0].mxu0
  %v300 = vpop.f32.mrb[0].mxu0
  %v301 = vpop.f32.mrb[0].mxu0
  %302 = vdwg.mxu0
  %v306 = vcombine.low %v257, %v259
  %v308 = vunpack.c.l.s4 1966171168
  %v309 = vunpack.c.0.s8 %v308
  %v310 = vlaneseq
  %v311 = vshrl.u32 %v310, 7
  %v312 = vsub.s32 %v309, %v311
  %v313 = vrot.slane %v306, %v312
  %v315 = vunpack.c.l.s4 1966171168
  %v316 = vunpack.c.0.s8 %v315
  %v317 = vlaneseq
  %v318 = vshrl.u32 %v317, 7
  %v319 = vsub.s32 %v316, %v318
  %v320 = vrot.slane %v298, %v319
  %v321 = vcombine.low %v313, %v320
  %v323 = vunpack.c.l.s4 1966171168
  %v324 = vunpack.c.0.s8 %v323
  %v325 = vlaneseq
  %v326 = vshrl.u32 %v325, 7
  %v327 = vsub.s32 %v324, %v326
  %v328 = vrot.slane %v321, %v327
  %v330 = vadd.f32 %v26, %v328
  %v331 = vlaneseq
  %vm332 = vcmp.ge.s32.totalorder %v331, 0
  %vm333 = vcmp.lt.s32.totalorder %v331, 304
  %vm334 = vmand %vm332, %vm333
  %335 = vst.msk [vmem:[#allocation2] sm:$0x7] %vm334, %v330
  // Predicated region
  $region18: #{logit_forward.1} parent=0 // pred_check
    %p336 = pneg %p17
  $region19: #{logit_forward.1} parent=0 // pred_check_branch
    %338 = sbr.rel (%p336) target = $region21
  $region20: #{logit_forward.1} parent=0 // pred_region
    %v339 = vld [vmem:[#allocation2] sm:$0x7]
    %v340 = vld [vmem:[#allocation3] sm:$0x1]
    %342 = vset.pattern.permute.xlu0 0
    %343 = vperm.xlu0 %342, %v340
    %v344 = vpop.permute.xlu0 %343
    %v346 = vlaneseq
    %v347 = vshrl.u32 %v346, 7
    %v348 = vsub.s32 0, %v347
    %v349 = vrot.slane %v344, %v348
    %v350 = vadd.f32 %v339, %v349
    %v351 = vsub.f32 0.0, %v350
    %v352 = vmul.f32 %v351, 1.442695
    %v353 = vpow.pop %v352
    %v354 = vadd.f32 %v353, 1.0
    %v355 = vrcp.pop %v354
    %356 = vst.msk [vmem:[%s3] sm:$0x7] %vm334, %v355
  $region21: #{logit_forward.1} parent=0 // pred_fallthru
    _
  // Predicated region
  $region22: #{logit_forward.1} parent=0 // pred_check
    _
  $region23: #{logit_forward.1} parent=0 // pred_check_branch
    %358 = sbr.rel (0) target = $region25
  $region24: #{logit_forward.1} parent=0 // pred_region
    _
  $region25: #{logit_forward.1} parent=0 // pred_fallthru
    _
  // Predicated region
  $region26: #{logit_forward.1} parent=0 // pred_check
    _
  $region27: #{logit_forward.1} parent=0 // pred_check_branch
    %360 = sbr.rel (0) target = $region29
  $region28: #{logit_forward.1} parent=0 // pred_region
    _
  $region29: #{logit_forward.1} parent=0 // pred_fallthru
    _

</llo_original>
